<compile_context>
chip_gen: v6e
topology: v6e:2x2x1
jax: 0.10.0
libtpu: 0.0.40
codegen_flags: <defaults>
</compile_context>

<pallas_src>
import functools

import jax
import jax.numpy as jnp
from jax.experimental import pallas as pl
from jax.experimental.pallas import tpu as pltpu


# ----------------------------------------------------------------------------
# Kernel
# ----------------------------------------------------------------------------
def _joints_kl_kernel(pred_ref, gt_ref, loss_ref, *, epsilon):
    """One tile: rows of flattened heatmaps -> per-row (weight-less) KL loss."""
    f32 = jnp.float32
    pred = pred_ref[...].astype(f32)          # (T, L)
    gt = gt_ref[...].astype(f32)              # (T, L)

    # log-softmax pieces along lanes: log_p = shifted - lse
    m = jnp.max(pred, axis=-1, keepdims=True)                          # (T, 1)
    shifted = pred - m                                                  # (T, L)
    lse = jnp.log(jnp.sum(jnp.exp(shifted), axis=-1, keepdims=True))    # (T, 1)

    # Fused KL:
    #   sum_j (gt_j/s) * (log(gt_j/s) - log_p_j)
    # = (1/s) * sum_j gt_j * (log gt_j - shifted_j) + lse - log s
    if epsilon != 0.0:
        # gt + eps is strictly positive: no xlogy clamp, no degenerate-row
        # guard needed (compile-time specialization).
        gt = gt + f32(epsilon)
        s = jnp.sum(gt, axis=-1, keepdims=True)                         # (T, 1)
        t = jnp.sum(gt * (jnp.log(gt) - shifted), axis=-1, keepdims=True)
        loss_ref[...] = t * pl.reciprocal(s) + lse - jnp.log(s)
    else:
        tiny = f32(1e-30)
        s = jnp.sum(gt, axis=-1, keepdims=True)                         # (T, 1)
        # xlogy convention (0 * log 0 := 0) falls out of the clamp: gt_j == 0
        # terms multiply a finite log by zero.
        t = jnp.sum(gt * (jnp.log(jnp.maximum(gt, tiny)) - shifted),
                    axis=-1, keepdims=True)                              # (T, 1)
        s_safe = jnp.maximum(s, tiny)
        loss = t * pl.reciprocal(s_safe) + lse - jnp.log(s_safe)         # (T, 1)
        # Degenerate rows (all-zero target, epsilon == 0) would be NaN in the
        # PyTorch module; define them as exactly 0 (documented deviation).
        loss_ref[...] = jnp.where(s > f32(0.0), loss, f32(0.0))


# ----------------------------------------------------------------------------
# Tiling policy
# ----------------------------------------------------------------------------
def _round_up(x, m):
    return (x + m - 1) // m * m


def _tile_policy():
    """Per-generation VMEM ceiling / tile budget / grid-shape policy.

    Defaults are v7x-safe (64 MiB VMEM per TensorCore, 2 TCs sharing the
    "parallel" grid axis).  On 128-MiB-VMEM parts (v5e/v6e) we raise the
    ceiling and budget and relax the step-count requirement (single TC).
    """
    vmem_limit = 48 * 1024 * 1024
    tile_budget = 32 * 1024 * 1024
    min_steps = 4
    want_even_steps = True
    try:
        info = pltpu.get_tpu_info()
        vmem_cap = getattr(info, "vmem_capacity_bytes", None)
        if vmem_cap is not None and vmem_cap >= 100 * 1024 * 1024:
            # v5e / v6e: 128 MiB VMEM, single TensorCore -> exploit it.
            vmem_limit = 80 * 1024 * 1024
            tile_budget = 56 * 1024 * 1024
            min_steps = 2
            want_even_steps = False
    except Exception:
        pass  # fall back to the v7x-safe defaults
    return vmem_limit, tile_budget, min_steps, want_even_steps


def _pick_row_tile(n_rows, length, in_itemsize, *, budget_bytes, min_steps,
                   want_even_steps, input_cap_bytes=8 * 1024 * 1024):
    """Largest row tile that fits the VMEM budget and the per-step byte cap.

    Footprint per tile row ~= 2 inputs x 2 pipeline buffers x itemsize x L
                              + ~4 live f32 tile-sized temporaries x L
    (elementwise chain is fused by Mosaic; the explicit vmem_limit leaves
    generous headroom above this estimate).
    """
    # VMEM safety net.
    vmem_per_row = length * (2 * 2 * in_itemsize + 4 * 4)
    tile = budget_bytes // max(vmem_per_row, 1)
    # Per-step input-byte cap (pred+gt): keeps every config in the ~85% of
    # HBM-roofline regime regardless of L / dtype (replaces the old row cap).
    input_per_row = 2 * length * in_itemsize
    tile = min(tile, input_cap_bytes // max(input_per_row, 1))
    # Never (much) bigger than the problem; keep the previously-validated
    # boundary-block behavior (tile <= floor8(n_rows) when n_rows >= 8).
    tile = min(tile, max(8, (n_rows // 8) * 8))
    # Keep at least `min_steps` grid steps when the problem is big enough
    # (pipelining; on v7x lets both TensorCores get overlapped work).
    if n_rows >= 8 * min_steps:
        tile = min(tile, max(8, (pl.cdiv(n_rows, min_steps) // 8) * 8))
    tile = max(8, (tile // 8) * 8)               # sublane multiple
    # v7x: nudge toward an even number of grid steps so the two TensorCores
    # split the "parallel" axis evenly.
    if want_even_steps:
        steps = pl.cdiv(n_rows, tile)
        if steps >= 2 and steps % 2 == 1:
            for cand in (_round_up(pl.cdiv(n_rows, steps + 1), 8),
                         (pl.cdiv(n_rows, steps + 1) // 8) * 8):
                cand = max(8, cand)
                if cand <= tile and pl.cdiv(n_rows, cand) % 2 == 0:
                    tile = cand
                    break
    return int(tile)


# ----------------------------------------------------------------------------
# Wrapper
# ----------------------------------------------------------------------------
def joints_kl_loss(output, target, target_weight=None, *, reduction="mean",
                   epsilon=0.0, row_tile=None, cast_inputs_to_bf16=False):
    """JAX/Pallas equivalent of marsda JointsKLLoss.forward.

    output, target: (B, K, H, W) heatmaps (f32 or bf16).
    target_weight: (B, K) or None.
    cast_inputs_to_bf16: opt-in fast path — casts the heatmaps to bf16 before
      the kernel (halves HBM read traffic on this HBM-bound kernel); numerics
      trade-off owned by the caller.
    Returns: scalar for reduction='mean'; (B,) for reduction='none'
    (matches the PyTorch `loss.mean(dim=-1)` on the (B, K) loss).
    """
    B, K, H, W = output.shape
    N, L = B * K, H * W

    pred = output.reshape(N, L)
    gt = target.reshape(N, L)
    if cast_inputs_to_bf16:
        pred = pred.astype(jnp.bfloat16)
        gt = gt.astype(jnp.bfloat16)

    vmem_limit, tile_budget, min_steps, want_even_steps = _tile_policy()

    if row_tile is None:
        itemsize = max(jnp.dtype(pred.dtype).itemsize,
                       jnp.dtype(gt.dtype).itemsize)
        row_tile = _pick_row_tile(N, L, itemsize,
                                  budget_bytes=tile_budget,
                                  min_steps=min_steps,
                                  want_even_steps=want_even_steps)

    num_tiles = pl.cdiv(N, row_tile)   # boundary block: OOB writes are dropped

    kernel = functools.partial(_joints_kl_kernel, epsilon=float(epsilon))

    loss_rows = pl.pallas_call(
        kernel,
        out_shape=jax.ShapeDtypeStruct((N, 1), jnp.float32),
        grid_spec=pltpu.PrefetchScalarGridSpec(
            num_scalar_prefetch=0,
            grid=(num_tiles,),
            in_specs=[
                pl.BlockSpec((row_tile, L), lambda i: (i, 0)),
                pl.BlockSpec((row_tile, L), lambda i: (i, 0)),
            ],
            out_specs=pl.BlockSpec((row_tile, 1), lambda i: (i, 0)),
        ),
        compiler_params=pltpu.CompilerParams(
            dimension_semantics=("parallel",),
            vmem_limit_bytes=vmem_limit,
        ),
    )(pred, gt)

    # Per-joint visibility weight + final reduction are (B, K)-sized glue:
    # cheaper in plain JAX than streaming a 4-byte-per-row side input.
    loss = loss_rows.reshape(B, K)
    if target_weight is not None:
        loss = loss * target_weight.reshape(B, K).astype(loss.dtype)
    if reduction == "mean":
        return jnp.mean(loss)
    elif reduction == "none":
        return jnp.mean(loss, axis=-1)
    else:
        raise ValueError(f"unsupported reduction: {reduction}")


# ----------------------------------------------------------------------------
# Pure-JAX reference (mirrors the PyTorch module, f32 math)
# ----------------------------------------------------------------------------
def _reference(output, target, target_weight, reduction, epsilon):
    B, K = output.shape[:2]
    log_p = jax.nn.log_softmax(
        output.reshape(B, K, -1).astype(jnp.float32), axis=-1)
    gt = target.reshape(B, K, -1).astype(jnp.float32) + epsilon
    gt = gt / jnp.sum(gt, axis=-1, keepdims=True)
    kl = jnp.where(gt > 0, gt * jnp.log(jnp.where(gt > 0, gt, 1.0)), 0.0) \
         - gt * log_p
    loss = jnp.sum(kl, axis=-1)
    if target_weight is not None:
        loss = loss * target_weight
    return jnp.mean(loss) if reduction == "mean" else jnp.mean(loss, axis=-1)


if __name__ == "__main__":
    key = jax.random.PRNGKey(0)

    def make_inputs(key, B, K, H, W, dtype=jnp.float32):
        k1, k2, k3 = jax.random.split(key, 3)
        out = jax.random.normal(k1, (B, K, H, W), dtype=jnp.float32)
        tgt = jax.nn.softmax(
            jax.random.normal(k2, (B, K, H * W), dtype=jnp.float32), axis=-1
        ).reshape(B, K, H, W)
        w = (jax.random.uniform(k3, (B, K)) > 0.3).astype(jnp.float32)
        return out.astype(dtype), tgt.astype(dtype), w

    k1, k2, k3 = jax.random.split(key, 3)
    atol = rtol = 1e-4

    # Case 1: small shapes consistent with the module, f32, weight, both
    # reductions.
    B, K, H, W = 2, 4, 16, 16
    out1, tgt1, w1 = make_inputs(k1, B, K, H, W)
    got_mean = joints_kl_loss(out1, tgt1, w1, reduction="mean")
    got_none = joints_kl_loss(out1, tgt1, w1, reduction="none")
    jax.block_until_ready((got_mean, got_none))
    assert jnp.allclose(got_mean, _reference(out1, tgt1, w1, "mean", 0.0),
                        atol=atol, rtol=rtol)
    assert jnp.allclose(got_none, _reference(out1, tgt1, w1, "none", 0.0),
                        atol=atol, rtol=rtol)

    # Case 2: N not a multiple of the row tile -> exercises the boundary block
    # (no host-side padding), with epsilon > 0 (specialized kernel path) and
    # no weight.
    B2, K2 = 3, 5
    out2, tgt2, _ = make_inputs(k2, B2, K2, 16, 16)
    got2 = joints_kl_loss(out2, tgt2, None, reduction="mean", epsilon=1e-6)
    jax.block_until_ready(got2)
    assert jnp.allclose(got2, _reference(out2, tgt2, None, "mean", 1e-6),
                        atol=atol, rtol=rtol)

    # Case 3: bf16 heatmaps supplied by the caller (half the HBM read traffic);
    # reference computes in f32 on the same bf16-rounded values.
    out3, tgt3 = out1.astype(jnp.bfloat16), tgt1.astype(jnp.bfloat16)
    got3 = joints_kl_loss(out3, tgt3, w1, reduction="mean")
    jax.block_until_ready(got3)
    assert jnp.allclose(got3, _reference(out3, tgt3, w1, "mean", 0.0),
                        atol=atol, rtol=rtol)

    # Case 4: fully-occluded joint (all-zero target row, weight 0) must not
    # produce NaN (the raw PyTorch module would NaN-poison the mean here).
    tgt4 = tgt1.at[0, 1].set(0.0)
    w4 = w1.at[0, 1].set(0.0)
    got4 = joints_kl_loss(out1, tgt4, w4, reduction="mean")
    jax.block_until_ready(got4)
    assert bool(jnp.isfinite(got4))

    # Case 5: larger, production-shaped case with N % 8 != 0 and N % row_tile
    # != 0 (multi-step grid + boundary block), f32.
    B5, K5, H5, W5 = 6, 17, 32, 32        # N = 102, L = 1024
    out5, tgt5, w5 = make_inputs(k3, B5, K5, H5, W5)
    got5 = joints_kl_loss(out5, tgt5, w5, reduction="mean")
    jax.block_until_ready(got5)
    assert jnp.allclose(got5, _reference(out5, tgt5, w5, "mean", 0.0),
                        atol=1e-3, rtol=1e-3)

    # Case 6: opt-in bf16 fast path (wrapper casts f32 -> bf16 before the
    # kernel); reference on the same bf16-rounded values.
    got6 = joints_kl_loss(out1, tgt1, w1, reduction="mean",
                          cast_inputs_to_bf16=True)
    jax.block_until_ready(got6)
    assert jnp.allclose(
        got6,
        _reference(out1.astype(jnp.bfloat16), tgt1.astype(jnp.bfloat16),
                   w1, "mean", 0.0),
        atol=atol, rtol=rtol)

    print("KERNEL_OK")
</pallas_src>

<mosaic_0001>
module attributes {stable_mosaic.version = 11 : i64} {
  func.func @_joints_kl_kernel(%arg0: i32, %arg1: memref<8x256xf32, #tpu.memory_space<vmem>>, %arg2: memref<8x256xf32, #tpu.memory_space<vmem>>, %arg3: memref<8x1xf32, #tpu.memory_space<vmem>>) attributes {dimension_semantics = [#tpu.dimension_semantics<parallel>], iteration_bounds = array<i64: 1>, scalar_prefetch = 0 : i64, scratch_operands = 0 : i64, tpu.core_type = #tpu.core_type<tc>, window_params = [{transform_indices = @transform_0, window_bounds = array<i64: 8, 256>}, {transform_indices = @transform_1, window_bounds = array<i64: 8, 256>}, {transform_indices = @transform_2, window_bounds = array<i64: 8, 1>}]} {
    %c0 = arith.constant 0 : index
    %c0_0 = arith.constant 0 : index
    %0 = vector.load %arg1[%c0, %c0_0] : memref<8x256xf32, #tpu.memory_space<vmem>>, vector<8x256xf32>
    %c0_1 = arith.constant 0 : index
    %c0_2 = arith.constant 0 : index
    %1 = vector.load %arg2[%c0_1, %c0_2] : memref<8x256xf32, #tpu.memory_space<vmem>>, vector<8x256xf32>
    %cst = arith.constant dense<0xFF800000> : vector<8xf32>
    %2 = vector.multi_reduction <maximumf>, %0, %cst [1] : vector<8x256xf32> to vector<8xf32>
    %3 = vector.shape_cast %2 : vector<8xf32> to vector<8x1xf32>
    %4 = vector.broadcast %3 : vector<8x1xf32> to vector<8x256xf32>
    %5 = arith.subf %0, %4 : vector<8x256xf32>
    %6 = math.exp %5 : vector<8x256xf32>
    %cst_3 = arith.constant dense<0.000000e+00> : vector<8xf32>
    %7 = vector.multi_reduction <add>, %6, %cst_3 [1] : vector<8x256xf32> to vector<8xf32>
    %8 = vector.shape_cast %7 : vector<8xf32> to vector<8x1xf32>
    %9 = math.log %8 : vector<8x1xf32>
    %cst_4 = arith.constant dense<0.000000e+00> : vector<8xf32>
    %10 = vector.multi_reduction <add>, %1, %cst_4 [1] : vector<8x256xf32> to vector<8xf32>
    %11 = vector.shape_cast %10 : vector<8xf32> to vector<8x1xf32>
    %cst_5 = arith.constant 1.000000e-30 : f32
    %12 = vector.broadcast %cst_5 : f32 to vector<8x256xf32>
    %13 = arith.maximumf %1, %12 : vector<8x256xf32>
    %14 = math.log %13 : vector<8x256xf32>
    %15 = arith.subf %14, %5 : vector<8x256xf32>
    %16 = arith.mulf %1, %15 : vector<8x256xf32>
    %cst_6 = arith.constant dense<0.000000e+00> : vector<8xf32>
    %17 = vector.multi_reduction <add>, %16, %cst_6 [1] : vector<8x256xf32> to vector<8xf32>
    %18 = vector.shape_cast %17 : vector<8xf32> to vector<8x1xf32>
    %cst_7 = arith.constant 1.000000e-30 : f32
    %19 = vector.broadcast %cst_7 : f32 to vector<8x1xf32>
    %20 = arith.maximumf %11, %19 : vector<8x1xf32>
    %21 = tpu.reciprocal %20 : vector<8x1xf32> -> vector<8x1xf32>
    %22 = arith.mulf %18, %21 : vector<8x1xf32>
    %23 = arith.addf %22, %9 : vector<8x1xf32>
    %24 = math.log %20 : vector<8x1xf32>
    %25 = arith.subf %23, %24 : vector<8x1xf32>
    %cst_8 = arith.constant 0.000000e+00 : f32
    %26 = vector.broadcast %cst_8 : f32 to vector<8x1xf32>
    %27 = arith.cmpf ogt, %11, %26 : vector<8x1xf32>
    %cst_9 = arith.constant 0.000000e+00 : f32
    %28 = vector.broadcast %cst_9 : f32 to vector<8x1xf32>
    %29 = arith.select %27, %25, %28 : vector<8x1xi1>, vector<8x1xf32>
    %c0_10 = arith.constant 0 : index
    %c0_11 = arith.constant 0 : index
    %30 = vector.load %arg3[%c0_10, %c0_11] : memref<8x1xf32, #tpu.memory_space<vmem>>, vector<8x1xf32>
    tpu.vector_store %arg3[%c0_10, %c0_11], %29 {strides = array<i32>} : memref<8x1xf32, #tpu.memory_space<vmem>>, vector<8x1xf32>,
    return
  }
  func.func @transform_0(%arg0: i32) -> (i32, i32) {
    %c0_i32 = arith.constant 0 : i32
    %c0_i32_0 = arith.constant 0 : i32
    return %arg0, %c0_i32 : i32, i32
  }
  func.func @transform_1(%arg0: i32) -> (i32, i32) {
    %c0_i32 = arith.constant 0 : i32
    %c0_i32_0 = arith.constant 0 : i32
    return %arg0, %c0_i32 : i32, i32
  }
  func.func @transform_2(%arg0: i32) -> (i32, i32) {
    %c0_i32 = arith.constant 0 : i32
    %c0_i32_0 = arith.constant 0 : i32
    return %arg0, %c0_i32 : i32, i32
  }
}

</mosaic_0001>

<llo_original>
// kernel: tpu_custom_call.1
$region0: #{tpu_custom_call.1}
  #allocation0 [shape = 'u32[]', space=smem, size = 0x4, offset = 0x4, fixed_abs, tag = 'smem constant byte address 0x4 - core index']
  #allocation1 [shape = 'u32[144,128]{1,0:T(1,128)}', space=vmem, size = 0x12000, scoped, tag = 'internal scratch']
  %s0 = inlined_call_operand.hbm [shape: f32[8,256], index: 0, kind: input, shape index: {}]
  %s1 = inlined_call_operand.hbm [shape: f32[8,256], index: 1, kind: input, shape index: {}]
  %s2 = inlined_call_operand.vmem [shape: f32[8,1], index: 2, kind: output, shape index: {}]
  %s3 = sld [smem:[#allocation0]]
  $region26: #{tpu_custom_call.1} parent=0
    _
  %s5 = ssub.s32 1, %s3
  %s6 = scalar_select 0, %s5, %s3
  $region1: #{tpu_custom_call.1} parent=0
    #allocation2 [shape = 'u8[8192]{0}', space=vmem, size = 0x2000, scoped, tag = 'input window, operand 0, single buffered']
    #allocation3 [shape = 's32[1]{0}', space=sflag, size = 0x4, scoped, tag = 'scoped memory for tpu_custom_call.1']
    #allocation4 [shape = 'u8[8192]{0}', space=vmem, size = 0x2000, scoped, tag = 'input window, operand 1, single buffered']
    #allocation5 [shape = 's32[1]{0}', space=sflag, size = 0x4, scoped, tag = 'scoped memory for tpu_custom_call.1']
    %7 = vsyncpa [#allocation3], 0
    %8 = vsyncpa [#allocation5], 0
    // Predicated region
    $region2: #{tpu_custom_call.1} parent=1 // pred_check
      _
    $region3: #{tpu_custom_call.1} parent=1 // pred_check_branch
      %10 = sbr.rel (0) target = $region5
    $region4: #{tpu_custom_call.1} parent=1 // pred_region
      %s12 = ssub.s32 256, 256
      %13 = vsyncadd [#allocation3], %s12
      %s15 = sshll.u32 [#allocation2], 4
      %s16 = int_to_ptr.vmem [resolvable:$true] %s15
      %18 = dma.hbm_to_vmem [thread:$0]  %s0, 256, %s16, [#allocation3]
    $region5: #{tpu_custom_call.1} parent=1 // pred_fallthru
      _
    // Predicated region
    $region6: #{tpu_custom_call.1} parent=1 // pred_check
      _
    $region7: #{tpu_custom_call.1} parent=1 // pred_check_branch
      %20 = sbr.rel (0) target = $region9
    $region8: #{tpu_custom_call.1} parent=1 // pred_region
      %s22 = ssub.s32 256, 256
      %23 = vsyncadd [#allocation5], %s22
      %s25 = sshll.u32 [#allocation4], 4
      %s26 = int_to_ptr.vmem [resolvable:$true] %s25
      %28 = dma.hbm_to_vmem [thread:$0]  %s1, 256, %s26, [#allocation5]
    $region9: #{tpu_custom_call.1} parent=1 // pred_fallthru
      _
    // Predicated region
    $region10: #{tpu_custom_call.1} parent=1 // pred_check
      _
    $region11: #{tpu_custom_call.1} parent=1 // pred_check_branch
      %30 = sbr.rel (0) target = $region13
    $region12: #{tpu_custom_call.1} parent=1 // pred_region
      %31 = dma.done [#allocation3], 256
    $region13: #{tpu_custom_call.1} parent=1 // pred_fallthru
      _
    // Predicated region
    $region14: #{tpu_custom_call.1} parent=1 // pred_check
      _
    $region15: #{tpu_custom_call.1} parent=1 // pred_check_branch
      %33 = sbr.rel (0) target = $region17
    $region16: #{tpu_custom_call.1} parent=1 // pred_region
      %34 = dma.done [#allocation5], 256
    $region17: #{tpu_custom_call.1} parent=1 // pred_fallthru
      _
    %v35 = vld [vmem:[#allocation2] sm:$0xff]
    %v36 = vld [vmem:[#allocation2 + $0x8] sm:$0xff]
    %v37 = vld [vmem:[#allocation4] sm:$0xff]
    %v38 = vld [vmem:[#allocation4 + $0x8] sm:$0xff]
    %v39 = vmax.f32 %v35, %v36
    %40 = vmax.xlane.f32.xlu0 %v39
    %v41 = vpop.xlane.xlu0 %40
    %v42 = vsub.f32 %v35, %v41
    %v43 = vsub.f32 %v36, %v41
    %v44 = vmul.f32 %v42, 1.442695
    %v45 = vpow.pop %v44
    %v46 = vmul.f32 %v43, 1.442695
    %v47 = vpow.pop %v46
    %v48 = vadd.f32 %v45, %v47
    %49 = vadd.xlane.f32.xlu0 %v48
    %v50 = vpop.xlane.xlu0 %49
    %v51 = vlog2.pop %v50
    %v52 = vmul.f32 %v51, 0.6931472
    %v53 = vadd.f32 %v37, %v38
    %54 = vadd.xlane.f32.xlu0 %v53
    %v55 = vpop.xlane.xlu0 %54
    %v56 = vmax.f32 %v37, 1e-30
    %v57 = vmax.f32 %v38, 1e-30
    %v58 = vlog2.pop %v56
    %v59 = vmul.f32 %v58, 0.6931472
    %v60 = vlog2.pop %v57
    %v61 = vmul.f32 %v60, 0.6931472
    %v62 = vsub.f32 %v59, %v42
    %v63 = vsub.f32 %v61, %v43
    %v64 = vmul.f32 %v37, %v62
    %v65 = vmul.f32 %v38, %v63
    %v66 = vadd.f32 %v64, %v65
    %67 = vadd.xlane.f32.xlu0 %v66
    %v68 = vpop.xlane.xlu0 %67
    %v69 = vmax.f32 %v55, 1e-30
    %v70 = vrcp.pop %v69
    %v71 = vmul.f32 %v68, %v70
    %v72 = vadd.f32 %v71, %v52
    %v73 = vlog2.pop %v69
    %v74 = vmul.f32 %v73, 0.6931472
    %v75 = vsub.f32 %v72, %v74
    %vm76 = vcmp.gt.f32.partialorder %v55, 0.0
    %v77 = vsel %vm76, %v75, 0.0
    %vm78 = vcmask 7168
    %79 = vst.msk [vmem:[%s2] sm:$0xff] %vm78, %v77
    // Predicated region
    $region18: #{tpu_custom_call.1} parent=1 // pred_check
      _
    $region19: #{tpu_custom_call.1} parent=1 // pred_check_branch
      %81 = sbr.rel (0) target = $region21
    $region20: #{tpu_custom_call.1} parent=1 // pred_region
      _
    $region21: #{tpu_custom_call.1} parent=1 // pred_fallthru
      _
    // Predicated region
    $region22: #{tpu_custom_call.1} parent=1 // pred_check
      _
    $region23: #{tpu_custom_call.1} parent=1 // pred_check_branch
      %83 = sbr.rel (0) target = $region25
    $region24: #{tpu_custom_call.1} parent=1 // pred_region
      _
    $region25: #{tpu_custom_call.1} parent=1 // pred_fallthru
      _
    %84 = vsyncpa [#allocation3], 1
    %85 = vsyncpa [#allocation5], 1

</llo_original>
